<compile_context>
chip_gen: v5e
topology: v5e:2x2
jax: 0.10.0
libtpu: 0.0.40
codegen_flags: <defaults>
</compile_context>

<pallas_src>
import numpy as np
import jax
import jax.numpy as jnp
from jax import lax
from jax.experimental import pallas as pl
from jax.experimental.pallas import tpu as pltpu


# ---------------------------------------------------------------------------
# Gaussian window helpers (match the PyTorch module: window_size=11, sigma=1.5)
# ---------------------------------------------------------------------------
def _gaussian_1d(window_size, sigma):
    xs = np.arange(window_size, dtype=np.float64)
    g = np.exp(-((xs - window_size // 2) ** 2) / (2.0 * sigma ** 2))
    return (g / g.sum()).astype(np.float32)


def _banded_conv_matrix(n, g):
    """(n, n) matrix M with out = x @ M == zero-'same'-padded 1-D conv of x."""
    k = len(g)
    pad = k // 2
    m = np.zeros((n, n), dtype=np.float32)
    for j in range(n):          # output index
        for t in range(k):      # window tap
            src = j + t - pad   # taps falling outside the image are zero pad
            if 0 <= src < n:
                m[src, j] += g[t]
    return m


# ---------------------------------------------------------------------------
# Block sizing: real per-step VMEM footprint, generation aware
# ---------------------------------------------------------------------------
def _vmem_capacity_bytes():
    try:
        return int(pltpu.get_tpu_info().vmem_capacity_bytes)
    except Exception:
        return 64 * 1024 * 1024        # v7x per-TensorCore figure (conservative)


def _block_footprint_bytes(bnc, H, W, in_bytes, mat_bytes):
    bw = bnc * W
    plane_f32 = H * bw * 4
    io = 2 * 2 * H * bw * in_bytes             # x & y tiles, double-buffered
    work = 24 * plane_f32                      # upcasts, 5-stack, t, c, epilogue temps
    mats = (bw * bw + 25 * H * H) * mat_bytes  # kron(I_Bnc,Gh) + kron(I_5,Gv)
    out = 2 * 8 * 128 * 4
    return io + work + mats + out


def _pick_block_planes(NC, H, W, in_bytes, mat_bytes, lane_target, budget_bytes):
    divs = [d for d in range(1, NC + 1) if NC % d == 0]
    feasible = [d for d in divs
                if _block_footprint_bytes(d, H, W, in_bytes, mat_bytes) <= budget_bytes]
    if not feasible:
        # TODO(synk): giant planes need H-strip tiling with a halo (see header).
        feasible = [1]
    # Prefer >= 2 grid blocks so both v7x TensorCores get work ("parallel" axis).
    multi = [d for d in feasible if NC // d >= 2]
    cands = multi if multi else feasible
    # Smallest pack reaching the lane target keeps kron(I_Bnc, Gh) small while
    # making DMA rows / vregs / MXU dims lane-dense.
    wide = [d for d in cands if d * W >= lane_target]
    return min(wide) if wide else max(cands)


# ---------------------------------------------------------------------------
# Kernel factory
# ---------------------------------------------------------------------------
def make_ssim_loss(N, C, H, W, window_size=11, sigma=1.5, size_average=True,
                   block_planes=None, matmul_dtype=jnp.bfloat16,
                   approx_recip=True, lane_target=256):
    # TODO(synk): size_average=False (per-image mean) path not implemented.
    assert size_average, "only size_average=True (module default) implemented"

    NC = N * C
    vmem_cap = _vmem_capacity_bytes()
    vmem_limit = min(40 * 1024 * 1024, (vmem_cap * 5) // 8)
    mat_bytes = jnp.dtype(matmul_dtype).itemsize

    if block_planes is None:
        Bnc = _pick_block_planes(NC, H, W, 4, mat_bytes, lane_target,
                                 budget_bytes=vmem_limit // 2)
    else:
        Bnc = block_planes
    assert NC % Bnc == 0, "block_planes must divide N*C"

    NB = NC // Bnc                 # grid size (>= 2 preferred for v7x dual-TC)
    Bw = Bnc * W                   # lane width of one block
    total = float(NC * H * W)
    C1 = 0.01 ** 2
    C2 = 0.03 ** 2

    g = _gaussian_1d(window_size, sigma)
    gh = _banded_conv_matrix(W, g)            # out = row @ gh   (within a plane)
    gv = _banded_conv_matrix(H, g).T          # out = gv @ slab  (along H)
    # Horizontal filter for a lane-packed (H, Bnc*W) slab: block-diagonal.
    GhB = jnp.asarray(np.kron(np.eye(Bnc, dtype=np.float32), gh), dtype=matmul_dtype)
    # Vertical filter for the 5 quantities stacked along the sublane axis.
    GvB = jnp.asarray(np.kron(np.eye(5, dtype=np.float32), gv), dtype=matmul_dtype)

    # Static choice of the per-lane partial-sum reduction tier.
    fold_sublanes = (H % 8 == 0)
    fold_lanes = fold_sublanes and (Bw % 128 == 0)
    pad_lanes = fold_sublanes and (not fold_lanes) and (Bw < 128)

    def kernel(x_ref, y_ref, gvb_ref, ghb_ref, out_ref):
        x = x_ref[0].astype(jnp.float32)                     # (H, Bw)
        y = y_ref[0].astype(jnp.float32)

        # Five quantities sharing the same gaussian filtering, stacked on the
        # sublane axis -> both filter passes are single 2-D MXU matmuls.
        s = jnp.concatenate([x, y, x * x, y * y, x * y], axis=0)   # (5H, Bw)

        ghb = ghb_ref[...]                                   # (Bw, Bw)
        gvb = gvb_ref[...]                                   # (5H, 5H)

        # Horizontal pass: (5H, Bw) @ kron(I_Bnc, Gh), f32 accumulation.
        t = lax.dot_general(s.astype(matmul_dtype), ghb,
                            (((1,), (0,)), ((), ())),
                            preferred_element_type=jnp.float32)
        # Vertical pass: weight-stationary kron(I_5, Gv) @ (5H, Bw).
        c = lax.dot_general(gvb, t.astype(matmul_dtype),
                            (((1,), (0,)), ((), ())),
                            preferred_element_type=jnp.float32)

        mu1 = c[0 * H:1 * H]
        mu2 = c[1 * H:2 * H]
        e_x2 = c[2 * H:3 * H]
        e_y2 = c[3 * H:4 * H]
        e_xy = c[4 * H:5 * H]

        mu1_sq = mu1 * mu1
        mu2_sq = mu2 * mu2
        mu1_mu2 = mu1 * mu2
        sigma1_sq = e_x2 - mu1_sq
        sigma2_sq = e_y2 - mu2_sq
        sigma12 = e_xy - mu1_mu2

        num = (2.0 * mu1_mu2 + C1) * (2.0 * sigma12 + C2)
        den = (mu1_sq + mu2_sq + C1) * (sigma1_sq + sigma2_sq + C2)
        ssim_map = num * pl.reciprocal(den, approx=approx_recip)   # (H, Bw)

        # Per-lane partial sums (pure vreg adds, no XLU); wrapper finishes the
        # tiny cross-lane reduce over the (NB, 8, 128) result.
        if fold_lanes:
            part = ssim_map.reshape(H // 8, 8, Bw // 128, 128).sum(axis=(0, 2))
        elif pad_lanes:
            part = ssim_map.reshape(H // 8, 8, Bw).sum(axis=0)
            part = jnp.concatenate(
                [part, jnp.zeros((8, 128 - Bw), jnp.float32)], axis=1)
        else:
            srow = lax.broadcasted_iota(jnp.int32, (8, 128), 0)
            scol = lax.broadcasted_iota(jnp.int32, (8, 128), 1)
            part = jnp.where((srow == 0) & (scol == 0), jnp.sum(ssim_map), 0.0)
        out_ref[...] = part.reshape(1, 8, 128)

    def _const_spec(shape):
        # Constant filter inputs never change across the grid: single-buffer.
        try:
            return pl.BlockSpec(shape, lambda i: (0, 0),
                                pipeline_mode=pl.Buffered(1))
        except TypeError:   # older jax: BlockSpec without pipeline_mode
            return pl.BlockSpec(shape, lambda i: (0, 0))

    pallas_fn = pl.pallas_call(
        kernel,
        out_shape=jax.ShapeDtypeStruct((NB, 8, 128), jnp.float32),
        grid=(NB,),
        in_specs=[
            pl.BlockSpec((1, H, Bw), lambda i: (i, 0, 0)),
            pl.BlockSpec((1, H, Bw), lambda i: (i, 0, 0)),
            _const_spec((5 * H, 5 * H)),
            _const_spec((Bw, Bw)),
        ],
        out_specs=pl.BlockSpec((1, 8, 128), lambda i: (i, 0, 0)),
        compiler_params=pltpu.CompilerParams(
            dimension_semantics=("parallel",),
            vmem_limit_bytes=int(vmem_limit)),
    )

    def _pack(img):
        # (N, C, H, W) -> (NB, H, Bnc*W): Bnc planes laid side by side on lanes.
        p = img.reshape(NB, Bnc, H, W).transpose(0, 2, 1, 3)
        return p.reshape(NB, H, Bw)

    def ssim_loss(img1, img2):
        partial = pallas_fn(_pack(img1), _pack(img2), GvB, GhB)   # (NB, 8, 128)
        return 1.0 - jnp.sum(partial) / total

    return ssim_loss


# ---------------------------------------------------------------------------
# Pure-JAX reference mirroring the PyTorch module (for validation)
# ---------------------------------------------------------------------------
def _ssim_loss_ref(img1, img2, window_size=11, sigma=1.5):
    N, C, H, W = img1.shape
    g = jnp.asarray(_gaussian_1d(window_size, sigma))
    w2d = jnp.outer(g, g)
    window = jnp.broadcast_to(w2d, (C, 1, window_size, window_size))
    pad = window_size // 2

    def conv(x):
        return lax.conv_general_dilated(
            x, window, window_strides=(1, 1),
            padding=[(pad, pad), (pad, pad)],
            dimension_numbers=("NCHW", "OIHW", "NCHW"),
            feature_group_count=C)

    mu1, mu2 = conv(img1), conv(img2)
    mu1_sq, mu2_sq, mu1_mu2 = mu1 * mu1, mu2 * mu2, mu1 * mu2
    s1 = conv(img1 * img1) - mu1_sq
    s2 = conv(img2 * img2) - mu2_sq
    s12 = conv(img1 * img2) - mu1_mu2
    C1, C2 = 0.01 ** 2, 0.03 ** 2
    ssim_map = ((2 * mu1_mu2 + C1) * (2 * s12 + C2)) / (
        (mu1_sq + mu2_sq + C1) * (s1 + s2 + C2))
    return 1.0 - ssim_map.mean()


if __name__ == "__main__":
    N, C, H, W = 2, 4, 16, 16
    key = jax.random.PRNGKey(0)
    k1, k2 = jax.random.split(key)
    img1 = jax.random.uniform(k1, (N, C, H, W), dtype=jnp.float32)
    img2 = jax.random.uniform(k2, (N, C, H, W), dtype=jnp.float32)

    ref = _ssim_loss_ref(img1, img2)

    # Exact path (f32 MXU operands, exact reciprocal): strict check.
    # Auto block selection picks Bnc=4 -> grid=(2,), Bw=64 (>=2 blocks path).
    loss_exact = make_ssim_loss(N, C, H, W, matmul_dtype=jnp.float32,
                                approx_recip=False)
    out_exact = loss_exact(img1, img2)
    jax.block_until_ready(out_exact)
    np.testing.assert_allclose(np.asarray(out_exact), np.asarray(ref),
                               rtol=5e-4, atol=5e-5)

    # Fully lane-dense single-block variant (Bnc=8 -> Bw=128) exercising the
    # dense per-lane partial-sum path; still exact arithmetic, strict check.
    loss_dense = make_ssim_loss(N, C, H, W, block_planes=8,
                                matmul_dtype=jnp.float32, approx_recip=False)
    out_dense = loss_dense(img1, img2)
    jax.block_until_ready(out_dense)
    np.testing.assert_allclose(np.asarray(out_dense), np.asarray(ref),
                               rtol=5e-4, atol=5e-5)

    # Fast production path (bf16 MXU operands + EUP approx reciprocal, the
    # defaults): bf16 operand rounding legitimately shifts the result, so use
    # a correspondingly looser tolerance.
    loss_fast = make_ssim_loss(N, C, H, W)
    out_fast = loss_fast(img1, img2)
    jax.block_until_ready(out_fast)
    np.testing.assert_allclose(np.asarray(out_fast), np.asarray(ref),
                               rtol=2e-2, atol=2e-3)

    print("KERNEL_OK")
</pallas_src>

<mosaic_0001>
module attributes {stable_mosaic.version = 11 : i64} {
  func.func @kernel(%arg0: i32, %arg1: memref<1x16x64xf32, #tpu.memory_space<vmem>>, %arg2: memref<1x16x64xf32, #tpu.memory_space<vmem>>, %arg3: memref<80x80xf32, #tpu.memory_space<vmem>>, %arg4: memref<64x64xf32, #tpu.memory_space<vmem>>, %arg5: memref<1x8x128xf32, #tpu.memory_space<vmem>>) attributes {dimension_semantics = [#tpu.dimension_semantics<parallel>], iteration_bounds = array<i64: 2>, scalar_prefetch = 0 : i64, scratch_operands = 0 : i64, tpu.core_type = #tpu.core_type<tc>, window_params = [{transform_indices = @transform_0, window_bounds = array<i64: 1, 16, 64>}, {transform_indices = @transform_1, window_bounds = array<i64: 1, 16, 64>}, {pipeline_mode = #tpu.pipeline_mode<synchronous>, transform_indices = @transform_2, window_bounds = array<i64: 80, 80>}, {pipeline_mode = #tpu.pipeline_mode<synchronous>, transform_indices = @transform_3, window_bounds = array<i64: 64, 64>}, {transform_indices = @transform_4, window_bounds = array<i64: 1, 8, 128>}]} {
    %c0 = arith.constant 0 : index
    %c0_0 = arith.constant 0 : index
    %c0_1 = arith.constant 0 : index
    %0 = vector.load %arg1[%c0, %c0_0, %c0_1] : memref<1x16x64xf32, #tpu.memory_space<vmem>>, vector<1x16x64xf32>
    %1 = vector.shape_cast %0 : vector<1x16x64xf32> to vector<16x64xf32>
    %c0_2 = arith.constant 0 : index
    %c0_3 = arith.constant 0 : index
    %c0_4 = arith.constant 0 : index
    %2 = vector.load %arg2[%c0_2, %c0_3, %c0_4] : memref<1x16x64xf32, #tpu.memory_space<vmem>>, vector<1x16x64xf32>
    %3 = vector.shape_cast %2 : vector<1x16x64xf32> to vector<16x64xf32>
    %4 = arith.mulf %1, %1 : vector<16x64xf32>
    %5 = arith.mulf %3, %3 : vector<16x64xf32>
    %6 = arith.mulf %1, %3 : vector<16x64xf32>
    %7 = tpu.concatenate %1, %3, %4, %5, %6 in 0 : vector<16x64xf32>, vector<16x64xf32>, vector<16x64xf32>, vector<16x64xf32>, vector<16x64xf32> -> vector<80x64xf32>
    %c0_5 = arith.constant 0 : index
    %c0_6 = arith.constant 0 : index
    %8 = vector.load %arg4[%c0_5, %c0_6] : memref<64x64xf32, #tpu.memory_space<vmem>>, vector<64x64xf32>
    %c0_7 = arith.constant 0 : index
    %c0_8 = arith.constant 0 : index
    %9 = vector.load %arg3[%c0_7, %c0_8] : memref<80x80xf32, #tpu.memory_space<vmem>>, vector<80x80xf32>
    %cst = arith.constant dense<0.000000e+00> : vector<80x64xf32>
    %10 = tpu.matmul %7, %8, %cst {dimension_numbers = #tpu.dot_dimension_numbers<[1], [0], [0], [1], [0, 0, 1, 1], [], []>} : vector<80x64xf32>, vector<64x64xf32>, vector<80x64xf32> -> vector<80x64xf32>
    %cst_9 = arith.constant dense<0.000000e+00> : vector<80x64xf32>
    %11 = tpu.matmul %9, %10, %cst_9 {dimension_numbers = #tpu.dot_dimension_numbers<[1], [0], [0], [1], [0, 0, 1, 1], [], []>} : vector<80x80xf32>, vector<80x64xf32>, vector<80x64xf32> -> vector<80x64xf32>
    %12 = vector.extract_strided_slice %11 {offsets = [0, 0], sizes = [16, 64], strides = [1, 1]} : vector<80x64xf32> to vector<16x64xf32>
    %13 = vector.extract_strided_slice %11 {offsets = [16, 0], sizes = [16, 64], strides = [1, 1]} : vector<80x64xf32> to vector<16x64xf32>
    %14 = vector.extract_strided_slice %11 {offsets = [32, 0], sizes = [16, 64], strides = [1, 1]} : vector<80x64xf32> to vector<16x64xf32>
    %15 = vector.extract_strided_slice %11 {offsets = [48, 0], sizes = [16, 64], strides = [1, 1]} : vector<80x64xf32> to vector<16x64xf32>
    %16 = vector.extract_strided_slice %11 {offsets = [64, 0], sizes = [16, 64], strides = [1, 1]} : vector<80x64xf32> to vector<16x64xf32>
    %17 = arith.mulf %12, %12 : vector<16x64xf32>
    %18 = arith.mulf %13, %13 : vector<16x64xf32>
    %19 = arith.mulf %12, %13 : vector<16x64xf32>
    %20 = arith.subf %14, %17 : vector<16x64xf32>
    %21 = arith.subf %15, %18 : vector<16x64xf32>
    %22 = arith.subf %16, %19 : vector<16x64xf32>
    %cst_10 = arith.constant 2.000000e+00 : f32
    %23 = vector.broadcast %cst_10 : f32 to vector<16x64xf32>
    %24 = arith.mulf %23, %19 : vector<16x64xf32>
    %cst_11 = arith.constant 9.99999974E-5 : f32
    %25 = vector.broadcast %cst_11 : f32 to vector<16x64xf32>
    %26 = arith.addf %24, %25 : vector<16x64xf32>
    %cst_12 = arith.constant 2.000000e+00 : f32
    %27 = vector.broadcast %cst_12 : f32 to vector<16x64xf32>
    %28 = arith.mulf %27, %22 : vector<16x64xf32>
    %cst_13 = arith.constant 8.99999984E-4 : f32
    %29 = vector.broadcast %cst_13 : f32 to vector<16x64xf32>
    %30 = arith.addf %28, %29 : vector<16x64xf32>
    %31 = arith.mulf %26, %30 : vector<16x64xf32>
    %32 = arith.addf %17, %18 : vector<16x64xf32>
    %cst_14 = arith.constant 9.99999974E-5 : f32
    %33 = vector.broadcast %cst_14 : f32 to vector<16x64xf32>
    %34 = arith.addf %32, %33 : vector<16x64xf32>
    %35 = arith.addf %20, %21 : vector<16x64xf32>
    %cst_15 = arith.constant 8.99999984E-4 : f32
    %36 = vector.broadcast %cst_15 : f32 to vector<16x64xf32>
    %37 = arith.addf %35, %36 : vector<16x64xf32>
    %38 = arith.mulf %34, %37 : vector<16x64xf32>
    %39 = tpu.reciprocal %38 : vector<16x64xf32> -> vector<16x64xf32>
    %40 = arith.mulf %31, %39 : vector<16x64xf32>
    %41 = vector.shape_cast %40 : vector<16x64xf32> to vector<2x8x64xf32>
    %cst_16 = arith.constant dense<0.000000e+00> : vector<8x64xf32>
    %42 = vector.multi_reduction <add>, %41, %cst_16 [0] : vector<2x8x64xf32> to vector<8x64xf32>
    %cst_17 = arith.constant 0.000000e+00 : f32
    %43 = vector.broadcast %cst_17 : f32 to vector<8x64xf32>
    %44 = tpu.concatenate %42, %43 in 1 : vector<8x64xf32>, vector<8x64xf32> -> vector<8x128xf32>
    %45 = vector.shape_cast %44 : vector<8x128xf32> to vector<1x8x128xf32>
    %c0_18 = arith.constant 0 : index
    %c0_19 = arith.constant 0 : index
    %c0_20 = arith.constant 0 : index
    %46 = vector.load %arg5[%c0_18, %c0_19, %c0_20] : memref<1x8x128xf32, #tpu.memory_space<vmem>>, vector<1x8x128xf32>
    tpu.vector_store %arg5[%c0_18, %c0_19, %c0_20], %45 {strides = array<i32>} : memref<1x8x128xf32, #tpu.memory_space<vmem>>, vector<1x8x128xf32>,
    return
  }
  func.func @transform_0(%arg0: i32) -> (i32, i32, i32) {
    %c0_i32 = arith.constant 0 : i32
    %c0_i32_0 = arith.constant 0 : i32
    %c0_i32_1 = arith.constant 0 : i32
    return %arg0, %c0_i32, %c0_i32_0 : i32, i32, i32
  }
  func.func @transform_1(%arg0: i32) -> (i32, i32, i32) {
    %c0_i32 = arith.constant 0 : i32
    %c0_i32_0 = arith.constant 0 : i32
    %c0_i32_1 = arith.constant 0 : i32
    return %arg0, %c0_i32, %c0_i32_0 : i32, i32, i32
  }
  func.func @transform_2(%arg0: i32) -> (i32, i32) {
    %c0_i32 = arith.constant 0 : i32
    %c0_i32_0 = arith.constant 0 : i32
    %c0_i32_1 = arith.constant 0 : i32
    return %c0_i32, %c0_i32_0 : i32, i32
  }
  func.func @transform_3(%arg0: i32) -> (i32, i32) {
    %c0_i32 = arith.constant 0 : i32
    %c0_i32_0 = arith.constant 0 : i32
    %c0_i32_1 = arith.constant 0 : i32
    return %c0_i32, %c0_i32_0 : i32, i32
  }
  func.func @transform_4(%arg0: i32) -> (i32, i32, i32) {
    %c0_i32 = arith.constant 0 : i32
    %c0_i32_0 = arith.constant 0 : i32
    %c0_i32_1 = arith.constant 0 : i32
    return %arg0, %c0_i32, %c0_i32_0 : i32, i32, i32
  }
}

</mosaic_0001>

<llo_original>
// kernel: tpu_custom_call.1
$region0: #{tpu_custom_call.1}
  #allocation0 [shape = 'u32[]', space=smem, size = 0x4, offset = 0x4, fixed_abs, tag = 'smem constant byte address 0x4 - core index']
  #allocation1 [shape = 'u32[72,128]{1,0:T(1,128)}', space=vmem, size = 0x9000, scoped, tag = 'internal scratch']
  %s0 = inlined_call_operand.hbm [shape: f32[2,16,64], index: 0, kind: input, shape index: {}]
  %s1 = inlined_call_operand.hbm [shape: f32[2,16,64], index: 1, kind: input, shape index: {}]
  %s2 = inlined_call_operand.hbm [shape: f32[80,80], index: 2, kind: input, shape index: {}]
  %s3 = inlined_call_operand.hbm [shape: f32[64,64], index: 3, kind: input, shape index: {}]
  %s4 = inlined_call_operand.hbm [shape: f32[2,8,128], index: 4, kind: output, shape index: {}]
  %s5 = sld [smem:[#allocation0]]
  $region65: #{tpu_custom_call.1} parent=0
    _
  %s7 = ssub.s32 1, %s5
  %s8 = scalar_select 0, %s7, %s5
  $region1: #{tpu_custom_call.1} parent=0
    #allocation2 [shape = 'u8[16384]{0}', space=vmem, size = 0x4000, scoped, tag = 'input window, operand 0']
    #allocation3 [shape = 's32[2]{0}', space=sflag, size = 0x8, scoped, tag = 'scoped memory for tpu_custom_call.1']
    #allocation4 [shape = 's32[2]{0}', space=sflag, size = 0x8, scoped, tag = 'scoped memory for tpu_custom_call.1']
    #allocation5 [shape = 'u8[16384]{0}', space=vmem, size = 0x4000, scoped, tag = 'input window, operand 1']
    #allocation6 [shape = 's32[2]{0}', space=sflag, size = 0x8, scoped, tag = 'scoped memory for tpu_custom_call.1']
    #allocation7 [shape = 'u8[40960]{0}', space=vmem, size = 0xa000, scoped, tag = 'input window, operand 2, single buffered']
    #allocation8 [shape = 'u8[32768]{0}', space=vmem, size = 0x8000, scoped, tag = 'input window, operand 3, single buffered']
    #allocation9 [shape = 's32[1]{0}', space=sflag, size = 0x4, scoped, tag = 'scoped memory for tpu_custom_call.1']
    #allocation10 [shape = 'u8[8192]{0}', space=vmem, size = 0x2000, scoped, tag = 'output window, operand 0']
    %9 = vsyncpa [#allocation3], 0
    %s10 = scalar_lea.sflag [#allocation3], 1
    %11 = vsyncpa %s10, 0
    %12 = vsyncpa [#allocation6], 0
    %s13 = scalar_lea.sflag [#allocation6], 1
    %14 = vsyncpa %s13, 0
    %15 = vsyncpa [#allocation9], 0
    %16 = vsyncpa [#allocation4], 0
    %s17 = scalar_lea.sflag [#allocation4], 1
    %18 = vsyncpa %s17, 0
    loop: start=0, step=1, limit=4
    $region2: #{tpu_custom_call.1} parent=1 // loop_pre_header
      _
    $region3: #{tpu_custom_call.1} parent=1 // loop_header
      %s20 = sphi 0, %s24
      %p21 = scmp.ge.s32.totalorder %s20, 4
      %s30 = sphi 0, %s32
      %s33 = sphi 0, %s30
      %s34 = sphi 0, %s33
      %s50 = sphi 0, %s34
      %s56 = sphi 0, %s58
      %s59 = sphi 0, %s56
      %s60 = sphi 0, %s59
      %s76 = sphi 0, %s60
      %s80 = sphi 0, %s80
      %s82 = sphi 0, %s80
      %s83 = sphi 0, %s82
      %s97 = sphi 0, %s83
      %s101 = sphi 0, %s101
      %s103 = sphi 0, %s101
      %s104 = sphi 0, %s103
      %s118 = sphi 0, %s104
      %s124 = sphi 0, %s126
      %s127 = sphi 0, %s124
      %s128 = sphi 0, %s127
      %s144 = sphi 0, %s128
    $region4: #{tpu_custom_call.1} parent=1 // loop_header_branch
      %23 = sbr.rel (%p21) target = $region8
    $region5: #{tpu_custom_call.1} parent=1 // loop_body
      %s25 = ssub.s32 %s20, 1
      %s26 = ssub.s32 %s20, 2
      %s27 = sadd.s32 %s20, 1
      %s28 = ssub.s32 %s20, %s27
      %p29 = scmp.eq.s32.totalorder %s28, 0
      %s31 = sadd.s32 %s30, 1
      %s32 = scalar_select %p29, %s30, %s31
      %p35 = pneg %p29
      %p36 = scmp.eq.s32.totalorder %s20, 1
      %p37 = por %p35, %p36
      %p38 = scmp.ne.s32.totalorder %s30, %s33
      %p39 = scmp.eq.s32.totalorder %s20, 0
      %p40 = por %p38, %p39
      %p41 = scmp.ne.s32.totalorder %s30, %s33
      %p42 = scmp.eq.s32.totalorder %s25, 1
      %p43 = por %p41, %p42
      %p44 = scmp.ne.s32.totalorder %s33, %s34
      %p45 = scmp.eq.s32.totalorder %s25, 0
      %p46 = por %p44, %p45
      %p47 = scmp.ne.s32.totalorder %s33, %s34
      %p48 = scmp.eq.s32.totalorder %s26, 1
      %p49 = por %p47, %p48
      %p51 = scmp.ne.s32.totalorder %s34, %s50
      %p52 = scmp.eq.s32.totalorder %s26, 0
      %p53 = por %p51, %p52
      %s54 = ssub.s32 %s20, %s27
      %p55 = scmp.eq.s32.totalorder %s54, 0
      %s57 = sadd.s32 %s56, 1
      %s58 = scalar_select %p55, %s56, %s57
      %p61 = pneg %p55
      %p62 = scmp.eq.s32.totalorder %s20, 1
      %p63 = por %p61, %p62
      %p64 = scmp.ne.s32.totalorder %s56, %s59
      %p65 = scmp.eq.s32.totalorder %s20, 0
      %p66 = por %p64, %p65
      %p67 = scmp.ne.s32.totalorder %s56, %s59
      %p68 = scmp.eq.s32.totalorder %s25, 1
      %p69 = por %p67, %p68
      %p70 = scmp.ne.s32.totalorder %s59, %s60
      %p71 = scmp.eq.s32.totalorder %s25, 0
      %p72 = por %p70, %p71
      %p73 = scmp.ne.s32.totalorder %s59, %s60
      %p74 = scmp.eq.s32.totalorder %s26, 1
      %p75 = por %p73, %p74
      %p77 = scmp.ne.s32.totalorder %s60, %s76
      %p78 = scmp.eq.s32.totalorder %s26, 0
      %p79 = por %p77, %p78
      %s81 = sadd.s32 %s80, 1
      %p84 = scmp.eq.s32.totalorder %s20, 1
      %p85 = scmp.ne.s32.totalorder %s80, %s82
      %p86 = scmp.eq.s32.totalorder %s20, 0
      %p87 = por %p85, %p86
      %p88 = scmp.ne.s32.totalorder %s80, %s82
      %p89 = scmp.eq.s32.totalorder %s25, 1
      %p90 = por %p88, %p89
      %p91 = scmp.ne.s32.totalorder %s82, %s83
      %p92 = scmp.eq.s32.totalorder %s25, 0
      %p93 = por %p91, %p92
      %p94 = scmp.ne.s32.totalorder %s82, %s83
      %p95 = scmp.eq.s32.totalorder %s26, 1
      %p96 = por %p94, %p95
      %p98 = scmp.ne.s32.totalorder %s83, %s97
      %p99 = scmp.eq.s32.totalorder %s26, 0
      %p100 = por %p98, %p99
      %s102 = sadd.s32 %s101, 1
      %p105 = scmp.eq.s32.totalorder %s20, 1
      %p106 = scmp.ne.s32.totalorder %s101, %s103
      %p107 = scmp.eq.s32.totalorder %s20, 0
      %p108 = por %p106, %p107
      %p109 = scmp.ne.s32.totalorder %s101, %s103
      %p110 = scmp.eq.s32.totalorder %s25, 1
      %p111 = por %p109, %p110
      %p112 = scmp.ne.s32.totalorder %s103, %s104
      %p113 = scmp.eq.s32.totalorder %s25, 0
      %p114 = por %p112, %p113
      %p115 = scmp.ne.s32.totalorder %s103, %s104
      %p116 = scmp.eq.s32.totalorder %s26, 1
      %p117 = por %p115, %p116
      %p119 = scmp.ne.s32.totalorder %s104, %s118
      %p120 = scmp.eq.s32.totalorder %s26, 0
      %p121 = por %p119, %p120
      %s122 = ssub.s32 %s20, %s27
      %p123 = scmp.eq.s32.totalorder %s122, 0
      %s125 = sadd.s32 %s124, 1
      %s126 = scalar_select %p123, %s124, %s125
      %p129 = pneg %p123
      %p130 = scmp.eq.s32.totalorder %s20, 1
      %p131 = por %p129, %p130
      %p132 = scmp.ne.s32.totalorder %s124, %s127
      %p133 = scmp.eq.s32.totalorder %s20, 0
      %p134 = por %p132, %p133
      %p135 = scmp.ne.s32.totalorder %s124, %s127
      %p136 = scmp.eq.s32.totalorder %s25, 1
      %p137 = por %p135, %p136
      %p138 = scmp.ne.s32.totalorder %s127, %s128
      %p139 = scmp.eq.s32.totalorder %s25, 0
      %p140 = por %p138, %p139
      %p141 = scmp.ne.s32.totalorder %s127, %s128
      %p142 = scmp.eq.s32.totalorder %s26, 1
      %p143 = por %p141, %p142
      %p145 = scmp.ne.s32.totalorder %s128, %s144
      %p146 = scmp.eq.s32.totalorder %s26, 0
      %p147 = por %p145, %p146
      %p148 = scmp.le.s32.totalorder 1, %s20
      %p149 = scmp.lt.s32.totalorder %s20, 3
      %p150 = pnand %p148, %p149
      %p151 = pneg %p150
      // Predicated region
      $region9: #{tpu_custom_call.1} parent=5 // pred_check
        _
      $region10: #{tpu_custom_call.1} parent=5 // pred_check_branch
        %153 = sbr.rel (%p150) target = $region12
      $region11: #{tpu_custom_call.1} parent=5 // pred_region
        %s154 = ssub.s32 %s20, 1
        // Predicated region
        $region13: #{tpu_custom_call.1} parent=11 // pred_check
          %p155 = pneg %p93
        $region14: #{tpu_custom_call.1} parent=11 // pred_check_branch
          %157 = sbr.rel (%p155) target = $region16
        $region15: #{tpu_custom_call.1} parent=11 // pred_region
          %159 = vsyncadd [#allocation6], 0
          %s160 = sshll.u32 %s2, 4
          %s161 = int_to_ptr.hbm [resolvable:$true] %s160
          %s162 = sshll.u32 [#allocation7], 4
          %s163 = int_to_ptr.vmem [resolvable:$true] %s162
          %168 = dma.hbm_to_vmem [thread:$0]  %s161, 1280, %s163, [#allocation6], 128, 128, 8
        $region16: #{tpu_custom_call.1} parent=11 // pred_fallthru
          _
        // Predicated region
        $region17: #{tpu_custom_call.1} parent=11 // pred_check
          %p169 = pneg %p114
        $region18: #{tpu_custom_call.1} parent=11 // pred_check_branch
          %171 = sbr.rel (%p169) target = $region20
        $region19: #{tpu_custom_call.1} parent=11 // pred_region
          %173 = vsyncadd [#allocation9], 0
          %s174 = sshll.u32 %s3, 4
          %s175 = int_to_ptr.hbm [resolvable:$true] %s174
          %s176 = sshll.u32 [#allocation8], 4
          %s177 = int_to_ptr.vmem [resolvable:$true] %s176
          %182 = dma.hbm_to_vmem [thread:$0]  %s175, 1024, %s177, [#allocation9], 128, 128, 8
        $region20: #{tpu_custom_call.1} parent=11 // pred_fallthru
          _
      $region12: #{tpu_custom_call.1} parent=5 // pred_fallthru
        _
      %p183 = scmp.lt.s32.totalorder %s20, 2
      // Predicated region
      $region21: #{tpu_custom_call.1} parent=5 // pred_check
        %p184 = pneg %p183
      $region22: #{tpu_custom_call.1} parent=5 // pred_check_branch
        %186 = sbr.rel (%p184) target = $region24
      $region23: #{tpu_custom_call.1} parent=5 // pred_region
        // Predicated region
        $region25: #{tpu_custom_call.1} parent=23 // pred_check
          %p187 = pneg %p40
        $region26: #{tpu_custom_call.1} parent=23 // pred_check_branch
          %189 = sbr.rel (%p187) target = $region28
        $region27: #{tpu_custom_call.1} parent=23 // pred_region
          %s190 = sand.u32 %s30, 1
          %s191 = scalar_lea.sflag [#allocation3], %s190
          %s192 = sand.u32 %s30, 1
          %s193 = smul.addr %s192, 16
          %s194 = scalar_lea.vmem [#allocation2], %s193
          %196 = vsyncadd %s191, 0
          %s197 = smul.addr %s20, 2
          %s198 = smul.addr %s197, 8
          %s199 = scalar_lea.hbm %s0, %s198
          %s200 = sshll.u32 %s199, 4
          %s201 = int_to_ptr.hbm [resolvable:$true] %s200
          %s202 = sshll.u32 %s194, 4
          %s203 = int_to_ptr.vmem [resolvable:$true] %s202
          %208 = dma.hbm_to_vmem [thread:$0]  %s201, 256, %s203, %s191, 128, 128, 8
        $region28: #{tpu_custom_call.1} parent=23 // pred_fallthru
          _
        // Predicated region
        $region29: #{tpu_custom_call.1} parent=23 // pred_check
          %p209 = pneg %p66
        $region30: #{tpu_custom_call.1} parent=23 // pred_check_branch
          %211 = sbr.rel (%p209) target = $region32
        $region31: #{tpu_custom_call.1} parent=23 // pred_region
          %s212 = sand.u32 %s20, 1
          %s213 = scalar_lea.sflag [#allocation6], %s212
          %s214 = sand.u32 %s56, 1
          %s215 = smul.addr %s214, 16
          %s216 = scalar_lea.vmem [#allocation5], %s215
          %218 = vsyncadd %s213, 0
          %s219 = smul.addr %s20, 2
          %s220 = smul.addr %s219, 8
          %s221 = scalar_lea.hbm %s1, %s220
          %s222 = sshll.u32 %s221, 4
          %s223 = int_to_ptr.hbm [resolvable:$true] %s222
          %s224 = sshll.u32 %s216, 4
          %s225 = int_to_ptr.vmem [resolvable:$true] %s224
          %230 = dma.hbm_to_vmem [thread:$0]  %s223, 256, %s225, %s213, 128, 128, 8
        $region32: #{tpu_custom_call.1} parent=23 // pred_fallthru
          _
      $region24: #{tpu_custom_call.1} parent=5 // pred_fallthru
        _
      %p231 = scmp.le.s32.totalorder 1, %s20
      %p232 = scmp.lt.s32.totalorder %s20, 3
      %p233 = pnand %p231, %p232
      %p234 = pneg %p233
      // Predicated region
      $region33: #{tpu_custom_call.1} parent=5 // pred_check
        _
      $region34: #{tpu_custom_call.1} parent=5 // pred_check_branch
        %236 = sbr.rel (%p233) target = $region36
      $region35: #{tpu_custom_call.1} parent=5 // pred_region
        %s237 = ssub.s32 %s20, 1
        %s238 = sand.u32 %s33, 1
        %s239 = scalar_lea.sflag [#allocation3], %s238
        %s240 = sand.u32 %s33, 1
        %s241 = smul.addr %s240, 16
        %s242 = scalar_lea.vmem [#allocation2], %s241
        // Predicated region
        $region37: #{tpu_custom_call.1} parent=35 // pred_check
          %p243 = pneg %p46
        $region38: #{tpu_custom_call.1} parent=35 // pred_check_branch
          %245 = sbr.rel (%p243) target = $region40
        $region39: #{tpu_custom_call.1} parent=35 // pred_region
          %247 = dma.done %s239, 256
        $region40: #{tpu_custom_call.1} parent=35 // pred_fallthru
          _
        %s248 = sand.u32 %s25, 1
        %s249 = scalar_lea.sflag [#allocation6], %s248
        %s250 = sand.u32 %s59, 1
        %s251 = smul.addr %s250, 16
        %s252 = scalar_lea.vmem [#allocation5], %s251
        // Predicated region
        $region41: #{tpu_custom_call.1} parent=35 // pred_check
          %p253 = pneg %p72
        $region42: #{tpu_custom_call.1} parent=35 // pred_check_branch
          %255 = sbr.rel (%p253) target = $region44
        $region43: #{tpu_custom_call.1} parent=35 // pred_region
          %257 = dma.done %s249, 256
        $region44: #{tpu_custom_call.1} parent=35 // pred_fallthru
          _
        // Predicated region
        $region45: #{tpu_custom_call.1} parent=35 // pred_check
          %p258 = pneg %p93
        $region46: #{tpu_custom_call.1} parent=35 // pred_check_branch
          %260 = sbr.rel (%p258) target = $region48
        $region47: #{tpu_custom_call.1} parent=35 // pred_region
          %262 = dma.done [#allocation6], 1280
        $region48: #{tpu_custom_call.1} parent=35 // pred_fallthru
          _
        // Predicated region
        $region49: #{tpu_custom_call.1} parent=35 // pred_check
          %p263 = pneg %p114
        $region50: #{tpu_custom_call.1} parent=35 // pred_check_branch
          %265 = sbr.rel (%p263) target = $region52
        $region51: #{tpu_custom_call.1} parent=35 // pred_region
          %267 = dma.done [#allocation9], 1024
        $region52: #{tpu_custom_call.1} parent=35 // pred_fallthru
          _
        %s268 = sand.u32 %s33, 1
        %s269 = scalar_lea.sflag [#allocation3], %s268
        %s270 = sand.u32 %s33, 1
        %s271 = smul.addr %s270, 16
        %s272 = scalar_lea.vmem [#allocation2], %s271
        %p273 = pneg %p46
        %p274 = pneg %p43
        %s275 = sand.u32 %s25, 1
        %s276 = scalar_lea.sflag [#allocation6], %s275
        %s277 = sand.u32 %s59, 1
        %s278 = smul.addr %s277, 16
        %s279 = scalar_lea.vmem [#allocation5], %s278
        %p280 = pneg %p72
        %p281 = pneg %p69
        %p282 = pneg %p93
        %p283 = pneg %p90
        %p284 = pneg %p114
        %p285 = pneg %p111
        %p286 = pneg %p140
        %p287 = pneg %p137
        %s288 = sand.u32 %s127, 1
        %s289 = scalar_lea.sflag [#allocation4], %s288
        %s290 = sand.u32 %s127, 1
        %s291 = smul.addr %s290, 8
        %s292 = scalar_lea.vmem [#allocation10], %s291
        %v293 = vld [vmem:[%s242] sm:$0xff]
        %v294 = vld [vmem:[%s242 + $0x8] sm:$0xff]
        %v295 = vld [vmem:[%s252] sm:$0xff]
        %v296 = vld [vmem:[%s252 + $0x8] sm:$0xff]
        %v297 = vmul.f32 %v293, %v293
        %v298 = vmul.f32 %v294, %v294
        %v299 = vmul.f32 %v295, %v295
        %v300 = vmul.f32 %v296, %v296
        %v301 = vmul.f32 %v293, %v295
        %v302 = vmul.f32 %v294, %v296
        %v303 = vld [vmem:[#allocation8] sm:$0xff]
        %v304 = vld [vmem:[#allocation8 + $0x8] sm:$0xff]
        %v305 = vld [vmem:[#allocation8 + $0x10] sm:$0xff]
        %v306 = vld [vmem:[#allocation8 + $0x18] sm:$0xff]
        %v307 = vld [vmem:[#allocation8 + $0x20] sm:$0xff]
        %v308 = vld [vmem:[#allocation8 + $0x28] sm:$0xff]
        %v309 = vld [vmem:[#allocation8 + $0x30] sm:$0xff]
        %v310 = vld [vmem:[#allocation8 + $0x38] sm:$0xff]
        %v311 = vld [vmem:[#allocation7] sm:$0xff]
        %v312 = vld [vmem:[#allocation7 + $0x8] sm:$0xff]
        %v313 = vld [vmem:[#allocation7 + $0x10] sm:$0xff]
        %v314 = vld [vmem:[#allocation7 + $0x18] sm:$0xff]
        %v315 = vld [vmem:[#allocation7 + $0x20] sm:$0xff]
        %v316 = vld [vmem:[#allocation7 + $0x28] sm:$0xff]
        %v317 = vld [vmem:[#allocation7 + $0x30] sm:$0xff]
        %v318 = vld [vmem:[#allocation7 + $0x38] sm:$0xff]
        %v319 = vld [vmem:[#allocation7 + $0x40] sm:$0xff]
        %v320 = vld [vmem:[#allocation7 + $0x48] sm:$0xff]
        %vm321 = vcmask 523264
        %v323 = vsel %vm321, %v293, 0
        %v326 = vsel %vm321, %v294, 0
        %v329 = vsel %vm321, %v295, 0
        %v332 = vsel %vm321, %v296, 0
        %v335 = vsel %vm321, %v297, 0
        %v338 = vsel %vm321, %v298, 0
        %v341 = vsel %vm321, %v299, 0
        %v344 = vsel %vm321, %v300, 0
        %v347 = vsel %vm321, %v301, 0
        %v350 = vsel %vm321, %v302, 0
        %352 = vmatpush.msra.mxu0 0.0
        %353 = vmatpush.msra.mxu0 0.0
        %354 = vmatpush.msra.mxu0 0.0
        %355 = vmatpush.msra.mxu0 0.0
        %356 = vmatpush.msra.mxu0 0.0
        %357 = vmatpush.msra.mxu0 0.0
        %358 = vmatpush.msra.mxu0 0.0
        %359 = vmatpush.msra.mxu0 0.0
        %360 = vmatpush.msra.mxu0 %v310
        %361 = vmatpush.msra.mxu0 %v309
        %362 = vmatpush.msra.mxu0 %v308
        %363 = vmatpush.msra.mxu0 %v307
        %364 = vmatpush.msra.mxu0 %v306
        %365 = vmatpush.msra.mxu0 %v305
        %366 = vmatpush.msra.mxu0 %v304
        %367 = vmatpush.msra.mxu0 %v303
        %368 = vmatmul.f32.gmra.mxu0 %v323
        %v369 = vpop.f32.mrf.mxu0
        %v370 = vadd.f32 0.0, %v369
        %371 = vmatmul.f32.gmra.mxu0 %v326
        %v372 = vpop.f32.mrf.mxu0
        %v373 = vadd.f32 0.0, %v372
        %374 = vmatmul.f32.gmra.mxu0 %v329
        %v375 = vpop.f32.mrf.mxu0
        %v376 = vadd.f32 0.0, %v375
        %377 = vmatmul.f32.gmra.mxu0 %v332
        %v378 = vpop.f32.mrf.mxu0
        %v379 = vadd.f32 0.0, %v378
        %380 = vmatmul.f32.gmra.mxu0 %v335
        %v381 = vpop.f32.mrf.mxu0
        %v382 = vadd.f32 0.0, %v381
        %383 = vmatmul.f32.gmra.mxu0 %v338
        %v384 = vpop.f32.mrf.mxu0
        %v385 = vadd.f32 0.0, %v384
        %386 = vmatmul.f32.gmra.mxu0 %v341
        %v387 = vpop.f32.mrf.mxu0
        %v388 = vadd.f32 0.0, %v387
        %389 = vmatmul.f32.gmra.mxu0 %v344
        %v390 = vpop.f32.mrf.mxu0
        %v391 = vadd.f32 0.0, %v390
        %392 = vmatmul.f32.gmra.mxu0 %v347
        %v393 = vpop.f32.mrf.mxu0
        %v394 = vadd.f32 0.0, %v393
        %395 = vmatmul.f32.gmra.mxu0 %v350
        %v396 = vpop.f32.mrf.mxu0
        %v397 = vadd.f32 0.0, %v396
        %398 = vdwg.mxu0
        %vm399 = vcmask 654336
        %v401 = vsel %vm399, %v311, 0
        %v404 = vsel %vm399, %v312, 0
        %v407 = vsel %vm399, %v313, 0
        %v410 = vsel %vm399, %v314, 0
        %v413 = vsel %vm399, %v315, 0
        %v416 = vsel %vm399, %v316, 0
        %v419 = vsel %vm399, %v317, 0
        %v422 = vsel %vm399, %v318, 0
        %v425 = vsel %vm399, %v319, 0
        %v428 = vsel %vm399, %v320, 0
        %430 = vmatpush.msra.mxu0 0.0
        %431 = vmatpush.msra.mxu0 0.0
        %432 = vmatpush.msra.mxu0 0.0
        %433 = vmatpush.msra.mxu0 0.0
        %434 = vmatpush.msra.mxu0 0.0
        %435 = vmatpush.msra.mxu0 0.0
        %436 = vmatpush.msra.mxu0 %v397
        %437 = vmatpush.msra.mxu0 %v394
        %438 = vmatpush.msra.mxu0 %v391
        %439 = vmatpush.msra.mxu0 %v388
        %440 = vmatpush.msra.mxu0 %v385
        %441 = vmatpush.msra.mxu0 %v382
        %442 = vmatpush.msra.mxu0 %v379
        %443 = vmatpush.msra.mxu0 %v376
        %444 = vmatpush.msra.mxu0 %v373
        %445 = vmatpush.msra.mxu0 %v370
        %446 = vmatmul.f32.gmra.mxu0 %v401
        %v447 = vpop.f32.mrf.mxu0
        %v448 = vadd.f32 0.0, %v447
        %449 = vmatmul.f32.gmra.mxu0 %v404
        %v450 = vpop.f32.mrf.mxu0
        %v451 = vadd.f32 0.0, %v450
        %452 = vmatmul.f32.gmra.mxu0 %v407
        %v453 = vpop.f32.mrf.mxu0
        %v454 = vadd.f32 0.0, %v453
        %455 = vmatmul.f32.gmra.mxu0 %v410
        %v456 = vpop.f32.mrf.mxu0
        %v457 = vadd.f32 0.0, %v456
        %458 = vmatmul.f32.gmra.mxu0 %v413
        %v459 = vpop.f32.mrf.mxu0
        %v460 = vadd.f32 0.0, %v459
        %461 = vmatmul.f32.gmra.mxu0 %v416
        %v462 = vpop.f32.mrf.mxu0
        %v463 = vadd.f32 0.0, %v462
        %464 = vmatmul.f32.gmra.mxu0 %v419
        %v465 = vpop.f32.mrf.mxu0
        %v466 = vadd.f32 0.0, %v465
        %467 = vmatmul.f32.gmra.mxu0 %v422
        %v468 = vpop.f32.mrf.mxu0
        %v469 = vadd.f32 0.0, %v468
        %470 = vmatmul.f32.gmra.mxu0 %v425
        %v471 = vpop.f32.mrf.mxu0
        %v472 = vadd.f32 0.0, %v471
        %473 = vmatmul.f32.gmra.mxu0 %v428
        %v474 = vpop.f32.mrf.mxu0
        %v475 = vadd.f32 0.0, %v474
        %476 = vdwg.mxu0
        %v477 = vmul.f32 %v448, %v448
        %v478 = vmul.f32 %v451, %v451
        %v479 = vmul.f32 %v454, %v454
        %v480 = vmul.f32 %v457, %v457
        %v481 = vmul.f32 %v448, %v454
        %v482 = vmul.f32 %v451, %v457
        %v483 = vsub.f32 %v460, %v477
        %v484 = vsub.f32 %v463, %v478
        %v485 = vsub.f32 %v466, %v479
        %v486 = vsub.f32 %v469, %v480
        %v487 = vsub.f32 %v472, %v481
        %v488 = vsub.f32 %v475, %v482
        %v489 = vmul.f32 %v481, 2.0
        %v490 = vmul.f32 %v482, 2.0
        %v491 = vadd.f32 %v489, 0.0001
        %v492 = vadd.f32 %v490, 0.0001
        %v493 = vmul.f32 %v487, 2.0
        %v494 = vmul.f32 %v488, 2.0
        %v495 = vadd.f32 %v493, 0.0009
        %v496 = vadd.f32 %v494, 0.0009
        %v497 = vmul.f32 %v491, %v495
        %v498 = vmul.f32 %v492, %v496
        %v499 = vadd.f32 %v477, %v479
        %v500 = vadd.f32 %v478, %v480
        %v501 = vadd.f32 %v499, 0.0001
        %v502 = vadd.f32 %v500, 0.0001
        %v503 = vadd.f32 %v483, %v485
        %v504 = vadd.f32 %v484, %v486
        %v505 = vadd.f32 %v503, 0.0009
        %v506 = vadd.f32 %v504, 0.0009
        %v507 = vmul.f32 %v501, %v505
        %v508 = vmul.f32 %v502, %v506
        %v509 = vrcp.pop %v507
        %v510 = vmul.f32 %v507, %v509
        %v511 = vsub.f32 1.0, %v510
        %v512 = vmul.f32 %v509, %v511
        %v513 = vadd.f32 %v509, %v512
        %vm514 = vweird.f32 %v507
        %vm515 = vweird.f32 %v509
        %vm516 = vmor %vm514, %vm515
        %v517 = vsel %vm516, %v509, %v513
        %v518 = vand.u32 2147483647, %v507
        %vm519 = vcmp.eq.f32.partialorder %v518, 8.507059e+37
        %v520 = vand.u32 %v507, 2147483648
        %v521 = vor.u32 1.1754944e-38, %v520
        %v522 = vsel %vm519, %v521, %v517
        %v523 = vrcp.pop %v508
        %v524 = vmul.f32 %v508, %v523
        %v525 = vsub.f32 1.0, %v524
        %v526 = vmul.f32 %v523, %v525
        %v527 = vadd.f32 %v523, %v526
        %vm528 = vweird.f32 %v508
        %vm529 = vweird.f32 %v523
        %vm530 = vmor %vm528, %vm529
        %v531 = vsel %vm530, %v523, %v527
        %v532 = vand.u32 2147483647, %v508
        %vm533 = vcmp.eq.f32.partialorder %v532, 8.507059e+37
        %v534 = vand.u32 %v508, 2147483648
        %v535 = vor.u32 1.1754944e-38, %v534
        %v536 = vsel %vm533, %v535, %v531
        %v537 = vmul.f32 %v497, %v522
        %v538 = vmul.f32 %v498, %v536
        %v539 = vsel %vm321, %v537, 0.0
        %v540 = vsel %vm321, %v538, 0.0
        %v541 = vadd.f32 %v539, %v540
        %v542 = vsel %vm321, %v541, 0.0
        %543 = vst [vmem:[%s292] sm:$0xff] %v542
        %s544 = sand.u32 %s127, 1
        %s545 = scalar_lea.sflag [#allocation4], %s544
        %s546 = sand.u32 %s127, 1
        %s547 = smul.addr %s546, 8
        %s548 = scalar_lea.vmem [#allocation10], %s547
        // Predicated region
        $region53: #{tpu_custom_call.1} parent=35 // pred_check
          %p549 = pneg %p137
        $region54: #{tpu_custom_call.1} parent=35 // pred_check_branch
          %551 = sbr.rel (%p549) target = $region56
        $region55: #{tpu_custom_call.1} parent=35 // pred_region
          %553 = vsyncadd %s545, 0
          %s554 = smul.addr %s25, 8
          %s555 = scalar_lea.hbm %s4, %s554
          %s557 = sshll.u32 %s548, 4
          %s558 = int_to_ptr.vmem [resolvable:$true] %s557
          %s559 = sshll.u32 %s555, 4
          %s560 = int_to_ptr.hbm [resolvable:$true] %s559
          %562 = dma.vmem_to_hbm [thread:$0]  %s558, 128, %s560, %s545
        $region56: #{tpu_custom_call.1} parent=35 // pred_fallthru
          _
      $region36: #{tpu_custom_call.1} parent=5 // pred_fallthru
        _
      %p563 = scmp.le.s32.totalorder 2, %s20
      // Predicated region
      $region57: #{tpu_custom_call.1} parent=5 // pred_check
        %p564 = pneg %p563
      $region58: #{tpu_custom_call.1} parent=5 // pred_check_branch
        %566 = sbr.rel (%p564) target = $region60
      $region59: #{tpu_custom_call.1} parent=5 // pred_region
        %s567 = ssub.s32 %s20, 2
        // Predicated region
        $region61: #{tpu_custom_call.1} parent=59 // pred_check
          %p568 = pneg %p143
        $region62: #{tpu_custom_call.1} parent=59 // pred_check_branch
          %570 = sbr.rel (%p568) target = $region64
        $region63: #{tpu_custom_call.1} parent=59 // pred_region
          %s571 = sand.u32 %s128, 1
          %s572 = scalar_lea.sflag [#allocation4], %s571
          %s573 = sand.u32 %s128, 1
          %s574 = smul.addr %s573, 8
          %s575 = scalar_lea.vmem [#allocation10], %s574
          %577 = dma.done %s572, 128
        $region64: #{tpu_custom_call.1} parent=59 // pred_fallthru
          _
      $region60: #{tpu_custom_call.1} parent=5 // pred_fallthru
        _
    $region6: #{tpu_custom_call.1} parent=1 // loop_footer
      %s24 = sadd.s32 1, %s20
    $region7: #{tpu_custom_call.1} parent=1 // loop_footer_branch
      %19 = sbr.rel target = $region3
    $region8: #{tpu_custom_call.1} parent=1 // loop_exit
      _
    %578 = vsyncpa [#allocation3], 1
    %s579 = scalar_lea.sflag [#allocation3], 1
    %580 = vsyncpa %s579, 1
    %581 = vsyncpa [#allocation6], 1
    %s582 = scalar_lea.sflag [#allocation6], 1
    %583 = vsyncpa %s582, 1
    %584 = vsyncpa [#allocation9], 1
    %585 = vsyncpa [#allocation4], 1
    %s586 = scalar_lea.sflag [#allocation4], 1
    %587 = vsyncpa %s586, 1

</llo_original>
